<compile_context>
chip_gen: v6e
topology: v6e:2x2x1
jax: 0.10.0
libtpu: 0.0.40
codegen_flags: <defaults>
</compile_context>

<pallas_src>
import jax
import jax.numpy as jnp
import numpy as np
from jax import lax
from jax.experimental import pallas as pl
from jax.experimental.pallas import tpu as pltpu


def _round_up(x, m):
    return ((x + m - 1) // m) * m


# ----------------------------------------------------------------------------
# Kernel: one fused MLP tile.  Shapes per grid step i:
#   xT_ref : (F, TB)   activations, feature-major, bf16 (F = H/2 + 8, padded)
#   w1_ref : (4H, F)   folded linear1 weight incl. bias column, bf16 (resident)
#   w2_ref : (4H, 1)   folded linear2 @ linear_out weight, f32 (resident)
#   c_ref  : (1, 1)    folded output bias, f32 (resident)
#   out_ref: (1, TB)   lane-dense per-row scalar output, f32
# ----------------------------------------------------------------------------
def loan_kernel(xT_ref, w1_ref, w2_ref, c_ref, out_ref):
    # (4H, F) @ (F, TB) on the MXU, f32 accumulation. Bias is folded into a
    # weight column (constant-1 feature row), so no separate bias add.
    h = jnp.dot(w1_ref[...], xT_ref[...], preferred_element_type=jnp.float32)
    h = jnp.maximum(h, 0.0)
    # Output reduction on VPU (mul) + XLU (cross-sublane sum): avoids a
    # degenerate M=1 MXU matmul.
    out = jnp.sum(w2_ref[...] * h, axis=0, keepdims=True)     # (1, TB)
    out_ref[...] = out + c_ref[...]


def loan_model_pallas(xT, w1f, w2o, cf, batch, tile_b):
    F, Bp = xT.shape
    H4 = w1f.shape[0]
    grid = (Bp // tile_b,)
    out = pl.pallas_call(
        loan_kernel,
        out_shape=jax.ShapeDtypeStruct((1, Bp), jnp.float32),
        grid=grid,
        in_specs=[
            pl.BlockSpec((F, tile_b), lambda i: (0, i)),   # stream batch tiles
            pl.BlockSpec((H4, F), lambda i: (0, 0)),       # resident weights
            pl.BlockSpec((H4, 1), lambda i: (0, 0)),
            pl.BlockSpec((1, 1), lambda i: (0, 0)),
        ],
        out_specs=pl.BlockSpec((1, tile_b), lambda i: (0, i)),
        compiler_params=pltpu.CompilerParams(
            dimension_semantics=("parallel",),
            vmem_limit_bytes=32 * 1024 * 1024),
    )(xT, w1f, w2o, cf)
    return out[0, :batch]


# ----------------------------------------------------------------------------
# Parameter construction (mirrors module __init__, weights pre-transposed to
# [in, out]) and offline folding of numeric_linear / bias / linear_out.
# ----------------------------------------------------------------------------
def init_params(key, hidden_size):
    H = hidden_size
    ks = jax.random.split(key, 16)

    def lin(kw, kb, fan_in, fan_out):
        bound = 1.0 / np.sqrt(fan_in)
        w = jax.random.uniform(kw, (fan_in, fan_out), jnp.float32, -bound, bound)
        b = jax.random.uniform(kb, (1, fan_out), jnp.float32, -bound, bound)
        return w, b

    params = {}
    params["emb1"] = jax.random.normal(ks[0], (4, H // 8), jnp.float32)
    params["emb2"] = jax.random.normal(ks[1], (6, H // 8), jnp.float32)
    params["emb3"] = jax.random.normal(ks[2], (7, H // 8), jnp.float32)
    params["emb4"] = jax.random.normal(ks[3], (2, H // 8), jnp.float32)
    params["wn"], params["bn"] = lin(ks[4], ks[5], 7, H // 2)          # numeric_linear
    params["w1"], params["b1"] = lin(ks[6], ks[7], H, 4 * H)           # block.linear1
    params["w2"], params["b2"] = lin(ks[8], ks[9], 4 * H, H)           # block.linear2
    params["wo"], params["bo"] = lin(ks[10], ks[11], H, 1)             # linear_out
    return params


def prepare_params(params, hidden_size):
    """Offline algebraic folding; done once in plain JAX (f32), then cast."""
    H = hidden_size
    hi = lax.Precision.HIGHEST
    w1 = params["w1"]                      # (H, 4H)
    w1_cat = w1[: H // 2]                  # (H/2, 4H) — embedding half
    w1_num = w1[H // 2:]                   # (H/2, 4H) — numeric half

    # Fold numeric_linear into linear1.
    w1n = jnp.dot(params["wn"], w1_num, precision=hi)                  # (7, 4H)
    b1f = params["b1"] + jnp.dot(params["bn"], w1_num, precision=hi)   # (1, 4H)

    # Fold linear_out into linear2.
    w2o = jnp.dot(params["w2"], params["wo"], precision=hi)            # (4H, 1)
    cf = jnp.dot(params["b2"], params["wo"], precision=hi) + params["bo"]  # (1, 1)

    # Feature-major folded weight: feature rows are
    #   [cat (H/2) | numeric (7) | bias-one (1) | zero pad].
    F_raw = H // 2 + 7 + 1
    F_pad = _round_up(F_raw, 16)           # bf16 sublane quantum (32 for H=32)
    w_feat = jnp.concatenate(
        [w1_cat, w1n, b1f, jnp.zeros((F_pad - F_raw, 4 * H), jnp.float32)],
        axis=0)                                                        # (F_pad, 4H)
    w1f = w_feat.T.astype(jnp.bfloat16)                                # (4H, F_pad)

    # Pre-transposed embedding tables so forward() can gather feature-major.
    return {
        "w1f": w1f,
        "w2o": w2o,                        # (4H, 1) f32
        "c": cf,                           # (1, 1)  f32
        "F_raw": F_raw,
        "F_pad": F_pad,
        "emb1T": params["emb1"].T,         # (H/8, 4)
        "emb2T": params["emb2"].T,         # (H/8, 6)
        "emb3T": params["emb3"].T,         # (H/8, 7)
        "emb4T": params["emb4"].T,         # (H/8, 2)
    }


def _choose_tile_b(B, tile_b_max):
    """Lane-aligned batch tile; >=2 grid steps when the batch allows (v7x)."""
    bp_min = _round_up(B, 128)
    if bp_min <= 128:
        return 128, 128
    tile = min(tile_b_max, _round_up((bp_min + 1) // 2, 128))
    Bp = _round_up(bp_min, tile)
    return tile, Bp


# ----------------------------------------------------------------------------
# Forward: embedding gathers / dict plumbing are plain-JAX glue (feature-major,
# so no activation transpose); the fused MLP runs in the Pallas kernel.
# ----------------------------------------------------------------------------
def forward(params, folded, num_features, cat_features, hidden_size,
            tile_b_max=8192):
    del params  # everything needed at runtime lives in `folded`
    # Feature-major gathers: each is (H/8, B).
    x1 = jnp.take(folded["emb1T"], cat_features["person_home_ownership"], axis=1)
    x2 = jnp.take(folded["emb2T"], cat_features["loan_intent"], axis=1)
    x3 = jnp.take(folded["emb3T"], cat_features["loan_grade"], axis=1)
    x4 = jnp.take(folded["emb4T"], cat_features["cb_person_default_on_file"], axis=1)
    # NOTE: relies on num_features dict insertion order matching the PyTorch
    # stacking order of num_features.values().
    x_num = jnp.stack([v for v in num_features.values()], axis=0)      # (7, B)
    x_num = x_num.astype(jnp.float32)
    B = x_num.shape[1]

    ones = jnp.ones((1, B), jnp.float32)                 # constant-1 row (bias)
    F_raw, F_pad = folded["F_raw"], folded["F_pad"]
    zpad = jnp.zeros((F_pad - F_raw, B), jnp.float32)
    xT = jnp.concatenate([x1, x2, x3, x4, x_num, ones, zpad], axis=0)  # (F_pad, B)

    tile_b, Bp = _choose_tile_b(B, tile_b_max)
    xT = jnp.pad(xT, ((0, 0), (0, Bp - B))).astype(jnp.bfloat16)       # (F_pad, Bp)
    return loan_model_pallas(xT, folded["w1f"], folded["w2o"], folded["c"],
                             B, tile_b)


def forward_reference(params, num_features, cat_features):
    """Pure-JAX, unfused f32 reference of the PyTorch forward."""
    hi = lax.Precision.HIGHEST
    x1 = params["emb1"][cat_features["person_home_ownership"]]
    x2 = params["emb2"][cat_features["loan_intent"]]
    x3 = params["emb3"][cat_features["loan_grade"]]
    x4 = params["emb4"][cat_features["cb_person_default_on_file"]]
    x_numeric = jnp.stack([v for v in num_features.values()], axis=-1)
    x_num = jnp.dot(x_numeric, params["wn"], precision=hi) + params["bn"]
    x = jnp.concatenate([x1, x2, x3, x4, x_num], axis=-1)
    h = jnp.maximum(jnp.dot(x, params["w1"], precision=hi) + params["b1"], 0.0)
    y = jnp.dot(h, params["w2"], precision=hi) + params["b2"]
    out = jnp.dot(y, params["wo"], precision=hi) + params["bo"]
    return out.squeeze(-1)


if __name__ == "__main__":
    HIDDEN = 32
    BATCH = 8

    key = jax.random.PRNGKey(0)
    kp, kn, k1, k2, k3, k4 = jax.random.split(key, 6)

    params = init_params(kp, HIDDEN)
    folded = prepare_params(params, HIDDEN)

    # 7 numeric features as a dict of (B,) arrays (insertion order matters,
    # matching torch's stacking of num_features.values()).
    num_names = ["person_age", "person_income", "person_emp_length",
                 "loan_amnt", "loan_int_rate", "loan_percent_income",
                 "cb_person_cred_hist_length"]
    num_vals = jax.random.normal(kn, (len(num_names), BATCH), jnp.float32)
    num_features = {name: num_vals[i] for i, name in enumerate(num_names)}

    cat_features = {
        "person_home_ownership": jax.random.randint(k1, (BATCH,), 0, 4),
        "loan_intent": jax.random.randint(k2, (BATCH,), 0, 6),
        "loan_grade": jax.random.randint(k3, (BATCH,), 0, 7),
        "cb_person_default_on_file": jax.random.randint(k4, (BATCH,), 0, 2),
    }

    out = forward(params, folded, num_features, cat_features, HIDDEN)
    out = jax.block_until_ready(out)

    ref = forward_reference(params, num_features, cat_features)
    assert out.shape == (BATCH,), out.shape
    # bf16 activation/weight stream vs. f32 HIGHEST reference -> bf16-level
    # tolerances.
    np.testing.assert_allclose(np.asarray(out), np.asarray(ref),
                               rtol=3e-2, atol=3e-2)
    print("KERNEL_OK")
</pallas_src>

<mosaic_0001>
module attributes {stable_mosaic.version = 11 : i64} {
  func.func @loan_kernel(%arg0: i32, %arg1: memref<32x128xbf16, #tpu.memory_space<vmem>>, %arg2: memref<128x32xbf16, #tpu.memory_space<vmem>>, %arg3: memref<128x1xf32, #tpu.memory_space<vmem>>, %arg4: memref<1x1xf32, #tpu.memory_space<vmem>>, %arg5: memref<1x128xf32, #tpu.memory_space<vmem>>) attributes {dimension_semantics = [#tpu.dimension_semantics<parallel>], iteration_bounds = array<i64: 1>, scalar_prefetch = 0 : i64, scratch_operands = 0 : i64, tpu.core_type = #tpu.core_type<tc>, window_params = [{transform_indices = @transform_0, window_bounds = array<i64: 32, 128>}, {pipeline_mode = #tpu.pipeline_mode<synchronous>, transform_indices = @transform_1, window_bounds = array<i64: 128, 32>}, {pipeline_mode = #tpu.pipeline_mode<synchronous>, transform_indices = @transform_2, window_bounds = array<i64: 128, 1>}, {pipeline_mode = #tpu.pipeline_mode<synchronous>, transform_indices = @transform_3, window_bounds = array<i64: 1, 1>}, {transform_indices = @transform_4, window_bounds = array<i64: 1, 128>}]} {
    %c0 = arith.constant 0 : index
    %c0_0 = arith.constant 0 : index
    %0 = vector.load %arg2[%c0, %c0_0] : memref<128x32xbf16, #tpu.memory_space<vmem>>, vector<128x32xbf16>
    %c0_1 = arith.constant 0 : index
    %c0_2 = arith.constant 0 : index
    %1 = vector.load %arg1[%c0_1, %c0_2] : memref<32x128xbf16, #tpu.memory_space<vmem>>, vector<32x128xbf16>
    %cst = arith.constant dense<0.000000e+00> : vector<128x128xf32>
    %2 = tpu.matmul %0, %1, %cst {dimension_numbers = #tpu.dot_dimension_numbers<[1], [0], [0], [1], [0, 0, 1, 1], [], []>} : vector<128x32xbf16>, vector<32x128xbf16>, vector<128x128xf32> -> vector<128x128xf32>
    %cst_3 = arith.constant 0.000000e+00 : f32
    %3 = vector.broadcast %cst_3 : f32 to vector<128x128xf32>
    %4 = arith.maximumf %2, %3 : vector<128x128xf32>
    %c0_4 = arith.constant 0 : index
    %c0_5 = arith.constant 0 : index
    %5 = vector.load %arg3[%c0_4, %c0_5] : memref<128x1xf32, #tpu.memory_space<vmem>>, vector<128x1xf32>
    %6 = vector.broadcast %5 : vector<128x1xf32> to vector<128x128xf32>
    %7 = arith.mulf %6, %4 : vector<128x128xf32>
    %cst_6 = arith.constant dense<0.000000e+00> : vector<128xf32>
    %8 = vector.multi_reduction <add>, %7, %cst_6 [0] : vector<128x128xf32> to vector<128xf32>
    %9 = vector.shape_cast %8 : vector<128xf32> to vector<1x128xf32>
    %c0_7 = arith.constant 0 : index
    %c0_8 = arith.constant 0 : index
    %10 = vector.load %arg4[%c0_7, %c0_8] : memref<1x1xf32, #tpu.memory_space<vmem>>, vector<1x1xf32>
    %11 = vector.broadcast %10 : vector<1x1xf32> to vector<1x128xf32>
    %12 = arith.addf %9, %11 : vector<1x128xf32>
    %c0_9 = arith.constant 0 : index
    %c0_10 = arith.constant 0 : index
    %13 = vector.load %arg5[%c0_9, %c0_10] : memref<1x128xf32, #tpu.memory_space<vmem>>, vector<1x128xf32>
    tpu.vector_store %arg5[%c0_9, %c0_10], %12 {strides = array<i32>} : memref<1x128xf32, #tpu.memory_space<vmem>>, vector<1x128xf32>,
    return
  }
  func.func @transform_0(%arg0: i32) -> (i32, i32) {
    %c0_i32 = arith.constant 0 : i32
    %c0_i32_0 = arith.constant 0 : i32
    return %c0_i32, %arg0 : i32, i32
  }
  func.func @transform_1(%arg0: i32) -> (i32, i32) {
    %c0_i32 = arith.constant 0 : i32
    %c0_i32_0 = arith.constant 0 : i32
    %c0_i32_1 = arith.constant 0 : i32
    return %c0_i32, %c0_i32_0 : i32, i32
  }
  func.func @transform_2(%arg0: i32) -> (i32, i32) {
    %c0_i32 = arith.constant 0 : i32
    %c0_i32_0 = arith.constant 0 : i32
    %c0_i32_1 = arith.constant 0 : i32
    return %c0_i32, %c0_i32_0 : i32, i32
  }
  func.func @transform_3(%arg0: i32) -> (i32, i32) {
    %c0_i32 = arith.constant 0 : i32
    %c0_i32_0 = arith.constant 0 : i32
    %c0_i32_1 = arith.constant 0 : i32
    return %c0_i32, %c0_i32_0 : i32, i32
  }
  func.func @transform_4(%arg0: i32) -> (i32, i32) {
    %c0_i32 = arith.constant 0 : i32
    %c0_i32_0 = arith.constant 0 : i32
    return %c0_i32, %arg0 : i32, i32
  }
}

</mosaic_0001>

<llo_original>
// kernel: tpu_custom_call.1
$region0: #{tpu_custom_call.1}
  #allocation0 [shape = 'u32[]', space=smem, size = 0x4, offset = 0x4, fixed_abs, tag = 'smem constant byte address 0x4 - core index']
  #allocation1 [shape = 'u32[144,128]{1,0:T(1,128)}', space=vmem, size = 0x12000, scoped, tag = 'internal scratch']
  #allocation2 [shape = 'f32[1,1]{1,0:T(1,128)S(1)}', space=vmem, size = 0x200, scoped, tag = 'scoped memory for tpu_custom_call.1']
  %s0 = inlined_call_operand.vmem [shape: bf16[32,128], index: 0, kind: input, shape index: {}]
  %s1 = inlined_call_operand.vmem [shape: bf16[128,32], index: 1, kind: input, shape index: {}]
  %s2 = inlined_call_operand.vmem [shape: f32[128,1], index: 2, kind: input, shape index: {}]
  %s3 = inlined_call_operand.<no memory space> [shape: f32[1,1], index: 3, kind: input, shape index: {}]
  %s4 = inlined_call_operand.hbm [shape: f32[1,128], index: 4, kind: output, shape index: {}]
  %s5 = sld [smem:[#allocation0]]
  $region26: #{tpu_custom_call.1} parent=0
    _
  %s7 = ssub.s32 1, %s5
  %s8 = scalar_select 0, %s7, %s5
  %v9 = vstv %s3
  %10 = vst [vmem:[#allocation2] sm:$0x1] %v9
  $region1: #{tpu_custom_call.1} parent=0
    #allocation3 [shape = 'u8[512]{0}', space=vmem, size = 0x400, scoped, tag = 'output window, operand 0, single buffered']
    #allocation4 [shape = 's32[1]{0}', space=sflag, size = 0x4, scoped, tag = 'scoped memory for tpu_custom_call.1']
    %11 = vsyncpa [#allocation4], 0
    // Predicated region
    $region2: #{tpu_custom_call.1} parent=1 // pred_check
      _
    $region3: #{tpu_custom_call.1} parent=1 // pred_check_branch
      %13 = sbr.rel (0) target = $region5
    $region4: #{tpu_custom_call.1} parent=1 // pred_region
      _
    $region5: #{tpu_custom_call.1} parent=1 // pred_fallthru
      _
    // Predicated region
    $region6: #{tpu_custom_call.1} parent=1 // pred_check
      _
    $region7: #{tpu_custom_call.1} parent=1 // pred_check_branch
      %15 = sbr.rel (0) target = $region9
    $region8: #{tpu_custom_call.1} parent=1 // pred_region
      _
    $region9: #{tpu_custom_call.1} parent=1 // pred_fallthru
      _
    // Predicated region
    $region10: #{tpu_custom_call.1} parent=1 // pred_check
      _
    $region11: #{tpu_custom_call.1} parent=1 // pred_check_branch
      %17 = sbr.rel (0) target = $region13
    $region12: #{tpu_custom_call.1} parent=1 // pred_region
      _
    $region13: #{tpu_custom_call.1} parent=1 // pred_fallthru
      _
    // Predicated region
    $region14: #{tpu_custom_call.1} parent=1 // pred_check
      _
    $region15: #{tpu_custom_call.1} parent=1 // pred_check_branch
      %19 = sbr.rel (0) target = $region17
    $region16: #{tpu_custom_call.1} parent=1 // pred_region
      _
    $region17: #{tpu_custom_call.1} parent=1 // pred_fallthru
      _
    %v21 = vld [vmem:[%s1] sm:$0xf]
    %v22 = vld [vmem:[%s1 + $0x4] sm:$0xf]
    %v23 = vld [vmem:[%s1 + $0x8] sm:$0xf]
    %v24 = vld [vmem:[%s1 + $0xc] sm:$0xf]
    %v25 = vld [vmem:[%s1 + $0x10] sm:$0xf]
    %v26 = vld [vmem:[%s1 + $0x14] sm:$0xf]
    %v27 = vld [vmem:[%s1 + $0x18] sm:$0xf]
    %v28 = vld [vmem:[%s1 + $0x1c] sm:$0xf]
    %v29 = vld [vmem:[%s1 + $0x20] sm:$0xf]
    %v30 = vld [vmem:[%s1 + $0x24] sm:$0xf]
    %v31 = vld [vmem:[%s1 + $0x28] sm:$0xf]
    %v32 = vld [vmem:[%s1 + $0x2c] sm:$0xf]
    %v33 = vld [vmem:[%s1 + $0x30] sm:$0xf]
    %v34 = vld [vmem:[%s1 + $0x34] sm:$0xf]
    %v35 = vld [vmem:[%s1 + $0x38] sm:$0xf]
    %v36 = vld [vmem:[%s1 + $0x3c] sm:$0xf]
    %v37 = vld [vmem:[%s0] sm:$0xf]
    %v38 = vld [vmem:[%s0 + $0x4] sm:$0xf]
    %v39 = vld [vmem:[%s0 + $0x8] sm:$0xf]
    %v40 = vld [vmem:[%s0 + $0xc] sm:$0xf]
    %v57 = vunpack.c.l.b16 %v21
    %v58 = vunpack.c.l.b16 %v22
    %v59 = vunpack.c.l.b16 %v23
    %v60 = vunpack.c.l.b16 %v24
    %v61 = vunpack.c.l.b16 %v25
    %v62 = vunpack.c.l.b16 %v26
    %v63 = vunpack.c.l.b16 %v27
    %v64 = vunpack.c.l.b16 %v28
    %v65 = vunpack.c.l.b16 %v29
    %v66 = vunpack.c.l.b16 %v30
    %v67 = vunpack.c.l.b16 %v31
    %v68 = vunpack.c.l.b16 %v32
    %v69 = vunpack.c.l.b16 %v33
    %v70 = vunpack.c.l.b16 %v34
    %v71 = vunpack.c.l.b16 %v35
    %v72 = vunpack.c.l.b16 %v36
    %v73 = vpack.c.b16 %v58, %v57
    %v74 = vpack.c.b16 %v60, %v59
    %v75 = vpack.c.b16 %v62, %v61
    %v76 = vpack.c.b16 %v64, %v63
    %v77 = vpack.c.b16 %v66, %v65
    %v78 = vpack.c.b16 %v68, %v67
    %v79 = vpack.c.b16 %v70, %v69
    %v80 = vpack.c.b16 %v72, %v71
    %v85 = vunpack.c.l.b16 %v37
    %v86 = vunpack.c.l.b16 %v38
    %v87 = vunpack.c.l.b16 %v39
    %v88 = vunpack.c.l.b16 %v40
    %v89 = vpack.c.b16 %v86, %v85
    %v90 = vpack.c.b16 %v88, %v87
    %vm93 = vcmask 261120
    %v95 = vsel %vm93, %v73, 0
    %v98 = vsel %vm93, %v74, 0
    %v101 = vsel %vm93, %v75, 0
    %v104 = vsel %vm93, %v76, 0
    %v107 = vsel %vm93, %v77, 0
    %v110 = vsel %vm93, %v78, 0
    %v113 = vsel %vm93, %v79, 0
    %v116 = vsel %vm93, %v80, 0
    %118 = vmatprep.subr.bf16.mxu0 0
    %119 = vmatpush1.bf16.msra.mxu0 0
    %120 = vmatprep.subr.bf16.mxu0 0
    %121 = vmatpush1.bf16.msra.mxu0 0
    %122 = vmatprep.subr.bf16.mxu0 0
    %123 = vmatpush1.bf16.msra.mxu0 0
    %124 = vmatprep.subr.bf16.mxu0 0
    %125 = vmatpush1.bf16.msra.mxu0 0
    %126 = vmatprep.subr.bf16.mxu0 0
    %127 = vmatpush1.bf16.msra.mxu0 0
    %128 = vmatprep.subr.bf16.mxu0 0
    %129 = vmatpush1.bf16.msra.mxu0 0
    %130 = vmatprep.subr.bf16.mxu0 0
    %131 = vmatpush1.bf16.msra.mxu0 %v90
    %132 = vmatprep.subr.bf16.mxu0 0
    %133 = vmatpush1.bf16.msra.mxu0 %v89
    %134 = vmatprep.subr.bf16.mxu0 0
    %135 = vmatpush2.bf16.msra.mxu0 0
    %136 = vmatprep.subr.bf16.mxu0 0
    %137 = vmatpush2.bf16.msra.mxu0 0
    %138 = vmatprep.subr.bf16.mxu0 0
    %139 = vmatpush2.bf16.msra.mxu0 0
    %140 = vmatprep.subr.bf16.mxu0 0
    %141 = vmatpush2.bf16.msra.mxu0 0
    %142 = vmatprep.subr.bf16.mxu0 0
    %143 = vmatpush2.bf16.msra.mxu0 0
    %144 = vmatprep.subr.bf16.mxu0 0
    %145 = vmatpush2.bf16.msra.mxu0 0
    %146 = vmatprep.subr.bf16.mxu0 0
    %147 = vmatpush2.bf16.msra.mxu0 0
    %148 = vmatprep.subr.bf16.mxu0 0
    %149 = vmatpush2.bf16.msra.mxu0 0
    %150 = vmatprep.mubr.bf16.mxu0 0
    %151 = vmatmul.mubr.bf16.gmra.mxu0 %v95
    %v152 = vpop.f32.mrf.mxu0
    %v153 = vadd.f32 0.0, %v152
    %v154 = vpop.f32.mrf.mxu0
    %v155 = vpop.f32.mrf.mxu0
    %v156 = vadd.f32 0.0, %v155
    %v157 = vpop.f32.mrf.mxu0
    %158 = vmatprep.mubr.bf16.mxu0 0
    %159 = vmatmul.mubr.bf16.gmra.mxu0 %v98
    %v160 = vpop.f32.mrf.mxu0
    %v161 = vadd.f32 0.0, %v160
    %v162 = vpop.f32.mrf.mxu0
    %v163 = vpop.f32.mrf.mxu0
    %v164 = vadd.f32 0.0, %v163
    %v165 = vpop.f32.mrf.mxu0
    %166 = vmatprep.mubr.bf16.mxu0 0
    %167 = vmatmul.mubr.bf16.gmra.mxu0 %v101
    %v168 = vpop.f32.mrf.mxu0
    %v169 = vadd.f32 0.0, %v168
    %v170 = vpop.f32.mrf.mxu0
    %v171 = vpop.f32.mrf.mxu0
    %v172 = vadd.f32 0.0, %v171
    %v173 = vpop.f32.mrf.mxu0
    %174 = vmatprep.mubr.bf16.mxu0 0
    %175 = vmatmul.mubr.bf16.gmra.mxu0 %v104
    %v176 = vpop.f32.mrf.mxu0
    %v177 = vadd.f32 0.0, %v176
    %v178 = vpop.f32.mrf.mxu0
    %v179 = vpop.f32.mrf.mxu0
    %v180 = vadd.f32 0.0, %v179
    %v181 = vpop.f32.mrf.mxu0
    %182 = vmatprep.mubr.bf16.mxu0 0
    %183 = vmatmul.mubr.bf16.gmra.mxu0 %v107
    %v184 = vpop.f32.mrf.mxu0
    %v185 = vadd.f32 0.0, %v184
    %v186 = vpop.f32.mrf.mxu0
    %v187 = vpop.f32.mrf.mxu0
    %v188 = vadd.f32 0.0, %v187
    %v189 = vpop.f32.mrf.mxu0
    %190 = vmatprep.mubr.bf16.mxu0 0
    %191 = vmatmul.mubr.bf16.gmra.mxu0 %v110
    %v192 = vpop.f32.mrf.mxu0
    %v193 = vadd.f32 0.0, %v192
    %v194 = vpop.f32.mrf.mxu0
    %v195 = vpop.f32.mrf.mxu0
    %v196 = vadd.f32 0.0, %v195
    %v197 = vpop.f32.mrf.mxu0
    %198 = vmatprep.mubr.bf16.mxu0 0
    %199 = vmatmul.mubr.bf16.gmra.mxu0 %v113
    %v200 = vpop.f32.mrf.mxu0
    %v201 = vadd.f32 0.0, %v200
    %v202 = vpop.f32.mrf.mxu0
    %v203 = vpop.f32.mrf.mxu0
    %v204 = vadd.f32 0.0, %v203
    %v205 = vpop.f32.mrf.mxu0
    %206 = vmatprep.mubr.bf16.mxu0 0
    %207 = vmatmul.mubr.bf16.gmra.mxu0 %v116
    %v208 = vpop.f32.mrf.mxu0
    %v209 = vadd.f32 0.0, %v208
    %v210 = vpop.f32.mrf.mxu0
    %v211 = vpop.f32.mrf.mxu0
    %v212 = vadd.f32 0.0, %v211
    %v213 = vpop.f32.mrf.mxu0
    %214 = vdwg.mxu0
    %v215 = vmax.f32 %v153, 0.0
    %v216 = vmax.f32 %v156, 0.0
    %v217 = vmax.f32 %v161, 0.0
    %v218 = vmax.f32 %v164, 0.0
    %v219 = vmax.f32 %v169, 0.0
    %v220 = vmax.f32 %v172, 0.0
    %v221 = vmax.f32 %v177, 0.0
    %v222 = vmax.f32 %v180, 0.0
    %v223 = vmax.f32 %v185, 0.0
    %v224 = vmax.f32 %v188, 0.0
    %v225 = vmax.f32 %v193, 0.0
    %v226 = vmax.f32 %v196, 0.0
    %v227 = vmax.f32 %v201, 0.0
    %v228 = vmax.f32 %v204, 0.0
    %v229 = vmax.f32 %v209, 0.0
    %v230 = vmax.f32 %v212, 0.0
    %v231 = vld [vmem:[%s2] sm:$0xff]
    %v232 = vld [vmem:[%s2 + $0x8] sm:$0xff]
    %v233 = vld [vmem:[%s2 + $0x10] sm:$0xff]
    %v234 = vld [vmem:[%s2 + $0x18] sm:$0xff]
    %v235 = vld [vmem:[%s2 + $0x20] sm:$0xff]
    %v236 = vld [vmem:[%s2 + $0x28] sm:$0xff]
    %v237 = vld [vmem:[%s2 + $0x30] sm:$0xff]
    %v238 = vld [vmem:[%s2 + $0x38] sm:$0xff]
    %v239 = vld [vmem:[%s2 + $0x40] sm:$0xff]
    %v240 = vld [vmem:[%s2 + $0x48] sm:$0xff]
    %v241 = vld [vmem:[%s2 + $0x50] sm:$0xff]
    %v242 = vld [vmem:[%s2 + $0x58] sm:$0xff]
    %v243 = vld [vmem:[%s2 + $0x60] sm:$0xff]
    %v244 = vld [vmem:[%s2 + $0x68] sm:$0xff]
    %v245 = vld [vmem:[%s2 + $0x70] sm:$0xff]
    %v246 = vld [vmem:[%s2 + $0x78] sm:$0xff]
    %248 = vset.pattern.permute.xlu0 0
    %249 = vperm.xlu0 %248, %v231
    %v250 = vpop.permute.xlu0 %249
    %253 = vset.pattern.permute.xlu0 0
    %254 = vperm.xlu0 %253, %v232
    %v255 = vpop.permute.xlu0 %254
    %258 = vset.pattern.permute.xlu0 0
    %259 = vperm.xlu0 %258, %v233
    %v260 = vpop.permute.xlu0 %259
    %263 = vset.pattern.permute.xlu0 0
    %264 = vperm.xlu0 %263, %v234
    %v265 = vpop.permute.xlu0 %264
    %268 = vset.pattern.permute.xlu0 0
    %269 = vperm.xlu0 %268, %v235
    %v270 = vpop.permute.xlu0 %269
    %273 = vset.pattern.permute.xlu0 0
    %274 = vperm.xlu0 %273, %v236
    %v275 = vpop.permute.xlu0 %274
    %278 = vset.pattern.permute.xlu0 0
    %279 = vperm.xlu0 %278, %v237
    %v280 = vpop.permute.xlu0 %279
    %283 = vset.pattern.permute.xlu0 0
    %284 = vperm.xlu0 %283, %v238
    %v285 = vpop.permute.xlu0 %284
    %288 = vset.pattern.permute.xlu0 0
    %289 = vperm.xlu0 %288, %v239
    %v290 = vpop.permute.xlu0 %289
    %293 = vset.pattern.permute.xlu0 0
    %294 = vperm.xlu0 %293, %v240
    %v295 = vpop.permute.xlu0 %294
    %298 = vset.pattern.permute.xlu0 0
    %299 = vperm.xlu0 %298, %v241
    %v300 = vpop.permute.xlu0 %299
    %303 = vset.pattern.permute.xlu0 0
    %304 = vperm.xlu0 %303, %v242
    %v305 = vpop.permute.xlu0 %304
    %308 = vset.pattern.permute.xlu0 0
    %309 = vperm.xlu0 %308, %v243
    %v310 = vpop.permute.xlu0 %309
    %313 = vset.pattern.permute.xlu0 0
    %314 = vperm.xlu0 %313, %v244
    %v315 = vpop.permute.xlu0 %314
    %318 = vset.pattern.permute.xlu0 0
    %319 = vperm.xlu0 %318, %v245
    %v320 = vpop.permute.xlu0 %319
    %323 = vset.pattern.permute.xlu0 0
    %324 = vperm.xlu0 %323, %v246
    %v325 = vpop.permute.xlu0 %324
    %v327 = vmul.f32 %v250, %v215
    %v328 = vmul.f32 %v255, %v216
    %v329 = vmul.f32 %v260, %v217
    %v330 = vmul.f32 %v265, %v218
    %v331 = vmul.f32 %v270, %v219
    %v332 = vmul.f32 %v275, %v220
    %v333 = vmul.f32 %v280, %v221
    %v334 = vmul.f32 %v285, %v222
    %v335 = vmul.f32 %v290, %v223
    %v336 = vmul.f32 %v295, %v224
    %v337 = vmul.f32 %v300, %v225
    %v338 = vmul.f32 %v305, %v226
    %v339 = vmul.f32 %v310, %v227
    %v340 = vmul.f32 %v315, %v228
    %v341 = vmul.f32 %v320, %v229
    %v342 = vmul.f32 %v325, %v230
    %v343 = vadd.f32 %v327, %v328
    %v344 = vadd.f32 %v343, %v329
    %v345 = vadd.f32 %v344, %v330
    %v346 = vadd.f32 %v345, %v331
    %v347 = vadd.f32 %v346, %v332
    %v348 = vadd.f32 %v347, %v333
    %v349 = vadd.f32 %v348, %v334
    %v350 = vadd.f32 %v349, %v335
    %v351 = vadd.f32 %v350, %v336
    %v352 = vadd.f32 %v351, %v337
    %v353 = vadd.f32 %v352, %v338
    %v354 = vadd.f32 %v353, %v339
    %v355 = vadd.f32 %v354, %v340
    %v356 = vadd.f32 %v355, %v341
    %v357 = vadd.f32 %v356, %v342
    %v358 = vrot.slane %v357, 4
    %v359 = vadd.f32 %v357, %v358
    %v360 = vrot.slane %v359, 2
    %v361 = vadd.f32 %v359, %v360
    %v362 = vrot.slane %v361, 1
    %v363 = vadd.f32 %v361, %v362
    %v364 = vld [vmem:[#allocation2] sm:$0x1]
    %366 = vset.pattern.permute.xlu0 0
    %367 = vperm.xlu0 %366, %v364
    %v368 = vpop.permute.xlu0 %367
    %v370 = vlaneseq
    %v371 = vshrl.u32 %v370, 7
    %v372 = vsub.s32 0, %v371
    %v373 = vrot.slane %v368, %v372
    %v374 = vadd.f32 %v363, %v373
    %375 = vst [vmem:[#allocation3] sm:$0x1] %v374
    // Predicated region
    $region18: #{tpu_custom_call.1} parent=1 // pred_check
      _
    $region19: #{tpu_custom_call.1} parent=1 // pred_check_branch
      %377 = sbr.rel (0) target = $region21
    $region20: #{tpu_custom_call.1} parent=1 // pred_region
      %s379 = ssub.s32 16, 16
      %380 = vsyncadd [#allocation4], %s379
      %s382 = sshll.u32 [#allocation3], 4
      %s383 = int_to_ptr.vmem [resolvable:$true] %s382
      %385 = dma.vmem_to_hbm [thread:$0]  %s383, 16, %s4, [#allocation4]
    $region21: #{tpu_custom_call.1} parent=1 // pred_fallthru
      _
    // Predicated region
    $region22: #{tpu_custom_call.1} parent=1 // pred_check
      _
    $region23: #{tpu_custom_call.1} parent=1 // pred_check_branch
      %387 = sbr.rel (0) target = $region25
    $region24: #{tpu_custom_call.1} parent=1 // pred_region
      %388 = dma.done [#allocation4], 16
    $region25: #{tpu_custom_call.1} parent=1 // pred_fallthru
      _
    %389 = vsyncpa [#allocation4], 1

</llo_original>
